<compile_context>
chip_gen: v6e
topology: v6e:2x2x1
jax: 0.10.0
libtpu: 0.0.40
codegen_flags: <defaults>
</compile_context>

<pallas_src>
import functools

import jax
import jax.numpy as jnp
from jax import lax
from jax.experimental import pallas as pl
from jax.experimental.pallas import tpu as pltpu

EPS = 1e-5                               # PyTorch BatchNorm2d default eps

_SLAB_SINGLE_BUFFER = None               # None = not probed yet; True/False after probe


# --------------------------------------------------------------------------------------
# small helpers
# --------------------------------------------------------------------------------------
def _round_up(x, m):
    return ((x + m - 1) // m) * m


@functools.lru_cache(maxsize=None)
def _vmem_limit_bytes():
    """Per-generation VMEM budget (leave ~25% headroom for compiler scratch)."""
    cap = 128 * 1024 * 1024
    try:
        info = pltpu.get_tpu_info()
        cap = int(getattr(info, "vmem_capacity_bytes", cap) or cap)
    except Exception:
        pass
    return max(32 * 1024 * 1024, min(int(cap * 3 // 4), 100 * 1024 * 1024))


def _pick_tm(m, cap=1024):
    """Row tile for the 1x1 GEMMs: full array when small, else a large aligned tile."""
    if m <= cap:
        return m
    for t in (1024, 512, 384, 256, 128):
        if m % t == 0:
            return t
    return cap  # tail block handled by Pallas' masked edge writes (rows independent)


def _pick_tn(n):
    """Output-channel tile (lane dim): lane-dense multiples of 128 when tiling."""
    if n > 256 and n % 256 == 0:
        return 256
    if n > 128 and n % 128 == 0:
        return 128
    return n


def _pick_row_tile(ho, wo, target_rows=2048, min_row_blocks=1):
    """Largest divisor th of Ho with th*Wo <= target, th*Wo 8-aligned when possible and
    at least `min_row_blocks` row blocks (so v7x's two TensorCores both get work)."""
    min_row_blocks = max(1, min(min_row_blocks, ho))
    divs = [t for t in range(1, ho + 1) if ho % t == 0]
    cands = [t for t in divs
             if t * wo <= max(target_rows, wo) and ho // t >= min_row_blocks]
    if not cands:
        cands = [1]
    aligned = [t for t in cands if (t * wo) % 8 == 0]
    return max(aligned) if aligned else max(cands)


def _phase_plan_1d(size, stride, dil):
    """Per-dimension sub-pixel phase plan.

    Uses the 'zero-stuff + flipped-kernel conv' formulation of ConvTranspose (and the
    plain dilated 3x3 conv when stride == 1) and removes the stuffed zeros analytically.
    Returns (out_size, lpad, rpad, phases) with phases[p] = (n_p, [(k, off), ...]):
    output index o = i*stride + p reads x[i + off] with tap weight index k.
    """
    if stride == 1:
        out = size
        phases = [(out, [(k, (k - 1) * dil) for k in range(3)])]
    else:
        out = (size - 1) * stride + dil + 1
        phases = []
        for p in range(stride):
            taps = []
            for k in range(3):
                j = p + (k - 1) * dil
                if j % stride == 0:
                    taps.append((k, j // stride))
            n_p = -(-(out - p) // stride)          # ceil
            phases.append((n_p, taps))
    offs = [off for (_, taps) in phases for (_, off) in taps]
    lpad = max(0, -min(offs)) if offs else 0
    rpad = 0
    for n_p, taps in phases:
        for _, off in taps:
            rpad = max(rpad, (n_p - 1) + off - (size - 1))
    return out, lpad, rpad, phases


# --------------------------------------------------------------------------------------
# Pallas kernel 1: fused 1x1 GEMM + folded BatchNorm (+ ReLU)   (conv1 / sample branch)
# --------------------------------------------------------------------------------------
def _gemm_bn_kernel(x_ref, w_ref, s_ref, b_ref, o_ref, *, relu):
    y = jnp.dot(x_ref[...], w_ref[...], preferred_element_type=jnp.float32)
    y = y * s_ref[...] + b_ref[...]
    if relu:
        y = jnp.maximum(y, 0.0)
    o_ref[...] = y.astype(o_ref.dtype)


def gemm_bn_act(x2d, w, scale, bias, *, relu, out_dtype=jnp.float32):
    """(M, K) @ (K, N) + BN affine (+ReLU).  x2d / w should already be bf16 for the MXU."""
    m, k = x2d.shape
    n = w.shape[1]
    tm, tn = _pick_tm(m), _pick_tn(n)
    grid = (pl.cdiv(m, tm), pl.cdiv(n, tn))
    cost = pl.CostEstimate(
        flops=int(2 * m * k * n), transcendentals=0,
        bytes_accessed=int(x2d.size * x2d.dtype.itemsize + w.size * w.dtype.itemsize
                           + (scale.size + bias.size) * 4
                           + m * n * jnp.dtype(out_dtype).itemsize))
    return pl.pallas_call(
        functools.partial(_gemm_bn_kernel, relu=relu),
        out_shape=jax.ShapeDtypeStruct((m, n), out_dtype),
        grid=grid,
        in_specs=[
            pl.BlockSpec((tm, k), lambda i, j: (i, 0)),
            pl.BlockSpec((k, tn), lambda i, j: (0, j)),
            pl.BlockSpec((1, tn), lambda i, j: (0, j)),
            pl.BlockSpec((1, tn), lambda i, j: (0, j)),
        ],
        out_specs=pl.BlockSpec((tm, tn), lambda i, j: (i, j)),
        compiler_params=pltpu.CompilerParams(
            dimension_semantics=("parallel", "parallel"),
            vmem_limit_bytes=_vmem_limit_bytes()),
        cost_estimate=cost,
    )(x2d, w, scale, bias)


# --------------------------------------------------------------------------------------
# Pallas kernel 2: fused 3x3-tap conv + bn2 + relu + 1x1 conv3 + bn3 (+ residual) + relu
# --------------------------------------------------------------------------------------
def _fused_conv_kernel(*refs, taps, th, wo, wp, cin, cmid, has_sc):
    # Slab is bf16, (1, Hp, Wp, Cin_pad).  Taps sharing a row offset reuse one contiguous
    # full-width (th*Wp, Cin) view; the dx column shift is applied to the GEMM result so
    # there are no per-tap im2col copies (and no 9*Cin concat) in VMEM.
    if has_sc:
        xp_ref, w2_ref, s2_ref, b2_ref, w3_ref, s3_ref, b3_ref, sc_ref, o_ref = refs
    else:
        xp_ref, w2_ref, s2_ref, b2_ref, w3_ref, s3_ref, b3_ref, o_ref = refs
        sc_ref = None

    r0 = pl.program_id(1) * th
    if th % 8 == 0:
        r0 = pl.multiple_of(r0, 8)

    by_dy = {}
    for t, (dy, dx) in enumerate(taps):
        by_dy.setdefault(dy, []).append((t, dx))

    acc = jnp.zeros((th, wo, cmid), jnp.float32)
    for dy, items in by_dy.items():
        lhs = xp_ref[0, pl.ds(r0 + dy, th), :, :].reshape(th * wp, cin)   # contiguous view
        for t, dx in items:
            z = jnp.dot(lhs, w2_ref[t], preferred_element_type=jnp.float32)
            acc = acc + z.reshape(th, wp, cmid)[:, dx:dx + wo, :]

    y2 = jnp.maximum(acc.reshape(th * wo, cmid) * s2_ref[...] + b2_ref[...], 0.0)  # bn2+relu
    y3 = jnp.dot(y2.astype(jnp.bfloat16), w3_ref[...],
                 preferred_element_type=jnp.float32)                               # conv3 1x1
    y3 = y3 * s3_ref[...] + b3_ref[...]                                            # bn3
    if has_sc:
        y3 = y3 + sc_ref[...].reshape(th * wo, -1)                                 # residual
    o_ref[...] = jnp.maximum(y3, 0.0).reshape(o_ref.shape).astype(o_ref.dtype)     # relu


def conv3x3_conv1x1_fused(xpad, w2, s2, b2, w3, s3, b3, shortcut, *, taps, out_hw, out_c):
    global _SLAB_SINGLE_BUFFER
    n, hp, wp, cin = xpad.shape
    ho, wo = out_hw
    ntaps = len(taps)
    cmid = w2.shape[-1]
    has_sc = shortcut is not None

    # keep >=2 parallel row blocks when the batch alone cannot feed both v7x TensorCores
    min_row_blocks = 1 if n >= 4 else -(-4 // max(n, 1))
    th = _pick_row_tile(ho, wo, target_rows=2048, min_row_blocks=min_row_blocks)

    kernel = functools.partial(_fused_conv_kernel, taps=tuple(taps), th=th, wo=wo, wp=wp,
                               cin=cin, cmid=cmid, has_sc=has_sc)
    m = n * ho * wo
    cost = pl.CostEstimate(
        flops=int(2 * n * ho * wp * ntaps * cin * cmid + 2 * m * cmid * out_c),
        transcendentals=0,
        bytes_accessed=int(xpad.size * xpad.dtype.itemsize
                           + (w2.size + w3.size) * 2
                           + (s2.size + b2.size + s3.size + b3.size) * 4
                           + (shortcut.size * 4 if has_sc else 0)
                           + m * out_c * 4))

    def _slab_spec(single_buffer):
        shape = (1, hp, wp, cin)
        imap = lambda b, r: (b, 0, 0, 0)
        if single_buffer:
            # whole-image slab only changes with the batch axis -> a single buffer saves
            # VMEM (important on v7x's 64 MiB) with no pipelining loss
            return pl.BlockSpec(shape, imap, pipeline_mode=pl.Buffered(1))
        return pl.BlockSpec(shape, imap)

    def _run(single_buffer):
        in_specs = [
            _slab_spec(single_buffer),
            pl.BlockSpec((ntaps, cin, cmid), lambda b, r: (0, 0, 0)),
            pl.BlockSpec((1, cmid), lambda b, r: (0, 0)),
            pl.BlockSpec((1, cmid), lambda b, r: (0, 0)),
            pl.BlockSpec((cmid, out_c), lambda b, r: (0, 0)),
            pl.BlockSpec((1, out_c), lambda b, r: (0, 0)),
            pl.BlockSpec((1, out_c), lambda b, r: (0, 0)),
        ]
        args = [xpad, w2, s2, b2, w3, s3, b3]
        if has_sc:
            in_specs.append(pl.BlockSpec((1, th, wo, out_c), lambda b, r: (b, r, 0, 0)))
            args.append(shortcut)
        return pl.pallas_call(
            kernel,
            out_shape=jax.ShapeDtypeStruct((n, ho, wo, out_c), jnp.float32),
            grid=(n, ho // th),
            in_specs=in_specs,
            out_specs=pl.BlockSpec((1, th, wo, out_c), lambda b, r: (b, r, 0, 0)),
            compiler_params=pltpu.CompilerParams(
                dimension_semantics=("parallel", "parallel"),
                vmem_limit_bytes=_vmem_limit_bytes()),
            cost_estimate=cost,
        )(*args)

    if _SLAB_SINGLE_BUFFER is None:          # probe single-buffering once
        if hasattr(pl, "Buffered"):
            try:
                out = _run(True)
                jax.block_until_ready(out)
                _SLAB_SINGLE_BUFFER = True
                return out
            except Exception:
                _SLAB_SINGLE_BUFFER = False
        else:
            _SLAB_SINGLE_BUFFER = False
    if _SLAB_SINGLE_BUFFER:
        return _run(True)
    return _run(False)


# --------------------------------------------------------------------------------------
# DeconvBottleneck forward (conv1x1 -> bn -> relu -> conv3x3 / deconv3x3 -> bn -> relu ->
#                           conv1x1 -> bn -> (+ shortcut) -> relu)
# --------------------------------------------------------------------------------------
def deconv_bottleneck_forward(x_nchw, p, *, stride=1, dilation=1, has_sample=False):
    # TODO(synk): groups > 1 (grouped conv/deconv) not implemented in the Pallas path.
    n, c, h, w = x_nchw.shape
    x = jnp.transpose(x_nchw, (0, 2, 3, 1)).astype(jnp.float32)       # NHWC (residual, f32)
    x_bf = x.astype(jnp.bfloat16)
    width = p['w1'].shape[0]
    out_c = p['w3'].shape[0]
    d = dilation
    cin_p = _round_up(width, 128)    # conv2 input channels (lane-padded)
    cmid_p = _round_up(width, 128)   # conv2 output channels (lane-padded)

    # ---- conv1 (1x1) + bn1 + relu  -> bf16 (only ever consumed by the bf16 MXU) --------
    h1 = gemm_bn_act(x_bf.reshape(n * h * w, c),
                     jnp.transpose(p['w1'][:, :, 0, 0]).astype(jnp.bfloat16),
                     p['s1'], p['b1'], relu=True, out_dtype=jnp.bfloat16)
    h1 = h1.reshape(n, h, w, width)

    # ---- sub-pixel phase plan (stride==1 -> single phase == plain dilated 3x3 conv) -----
    ho, lpy, rpy, phases_y = _phase_plan_1d(h, stride, d)
    wo, lpx, rpx, phases_x = _phase_plan_1d(w, stride, d)

    # padded (NOT zero-stuffed) bf16 slab, channels lane-padded to a multiple of 128
    xpad = jnp.pad(h1, ((0, 0), (lpy, rpy), (lpx, rpx), (0, cin_p - width)))

    # tap weight bank (3, 3, Cin_pad, Cmid_pad), correlation orientation used by the plan
    if stride == 1:
        wbank = jnp.transpose(p['w2'], (2, 3, 1, 0))                     # Conv2d OIHW
    else:
        wbank = jnp.transpose(jnp.flip(p['w2'], (2, 3)), (2, 3, 0, 1))   # ConvT, flipped
    wbank = jnp.pad(wbank, ((0, 0), (0, 0), (0, cin_p - width), (0, cmid_p - width)))
    wbank = wbank.astype(jnp.bfloat16)

    s2 = jnp.pad(p['s2'], ((0, 0), (0, cmid_p - width)))
    b2 = jnp.pad(p['b2'], ((0, 0), (0, cmid_p - width)))
    w3 = jnp.pad(jnp.transpose(p['w3'][:, :, 0, 0]),
                 ((0, cmid_p - width), (0, 0))).astype(jnp.bfloat16)

    # ---- shortcut -----------------------------------------------------------------------
    if has_sample:
        # sample := ConvTranspose2d(C, out_c, 1, stride, output_padding=stride-1) + BN.
        # It contributes BN(x @ ws) only at the (::stride, ::stride) positions (= phase
        # (0,0)); every other phase sees only the BN bias, folded into bn3's bias below.
        if stride > 1:
            assert ho == stride * h and wo == stride * w, \
                "sample/main-path shapes only match when dilation == stride - 1"
        y = gemm_bn_act(x_bf.reshape(n * h * w, c),
                        p['ws'][:, :, 0, 0].astype(jnp.bfloat16),
                        p['ss'], p['bs'], relu=False, out_dtype=jnp.float32)
        sc00 = y.reshape(n, h, w, out_c)
        b3_bias_only = p['b3'] + p['bs']
    else:
        assert stride == 1 and out_c == c, "identity shortcut needs stride==1 and out_c==C"
        sc00 = x
        b3_bias_only = None

    # ---- fused conv2+bn2+relu+conv3+bn3(+shortcut)+relu, once per sub-pixel phase -------
    phase_out = {}
    for py, (n_py, taps_y) in enumerate(phases_y):
        for px, (n_px, taps_x) in enumerate(phases_x):
            taps, wsel = [], []
            for ky, offy in taps_y:
                for kx, offx in taps_x:
                    taps.append((offy + lpy, offx + lpx))
                    wsel.append(wbank[ky, kx])
            if wsel:
                w2_ph = jnp.stack(wsel, axis=0)
            else:  # degenerate phase with no contributing taps (e.g. dilation % stride == 0)
                taps, w2_ph = [(0, 0)], jnp.zeros((1, cin_p, cmid_p), jnp.bfloat16)
            if py == 0 and px == 0:
                sc, b3 = sc00, p['b3']
            else:
                sc, b3 = None, b3_bias_only
            phase_out[(py, px)] = conv3x3_conv1x1_fused(
                xpad, w2_ph, s2, b2, w3, p['s3'], b3, sc,
                taps=tuple(taps), out_hw=(n_py, n_px), out_c=out_c)

    # ---- interleave the phases back into the full-resolution output ---------------------
    if stride == 1:
        out = phase_out[(0, 0)]
    else:
        hph, wph = ho // stride, wo // stride
        uniform = (hph * stride == ho and wph * stride == wo and
                   all(v.shape[1] == hph and v.shape[2] == wph for v in phase_out.values()))
        if uniform:
            ph = jnp.stack([phase_out[(py, px)]
                            for py in range(stride) for px in range(stride)], axis=0)
            ph = ph.reshape(stride, stride, n, hph, wph, out_c)
            out = ph.transpose(2, 3, 0, 4, 1, 5).reshape(n, ho, wo, out_c)
        else:
            out = jnp.zeros((n, ho, wo, out_c), jnp.float32)
            for (py, px), v in phase_out.items():
                out = out.at[:, py::stride, px::stride, :].set(v)

    return jnp.transpose(out, (0, 3, 1, 2))                               # back to NCHW


# --------------------------------------------------------------------------------------
# Deterministic parameter init (shapes from DeconvBottleneck.__init__) + folded BN
# --------------------------------------------------------------------------------------
def make_params(key, inplanes, planes, *, stride=1, base_width=64, groups=1, with_sample=False):
    expansion = 4
    mid = inplanes // expansion
    width = int(mid * (base_width / 64.0)) * groups
    out_c = planes * expansion
    ks = list(jax.random.split(key, 24))

    def bn_fold(c):
        kg, kb, km, kv = ks.pop(), ks.pop(), ks.pop(), ks.pop()
        gamma = 1.0 + 0.1 * jax.random.normal(kg, (c,), jnp.float32)
        beta = 0.1 * jax.random.normal(kb, (c,), jnp.float32)
        mean = 0.1 * jax.random.normal(km, (c,), jnp.float32)
        var = jax.random.uniform(kv, (c,), jnp.float32, minval=0.5, maxval=1.5)
        scale = gamma * lax.rsqrt(var + EPS)
        bias = beta - mean * scale
        return scale.reshape(1, c), bias.reshape(1, c)

    p = {}
    p['w1'] = 0.2 * jax.random.normal(ks.pop(), (width, inplanes, 1, 1), jnp.float32)   # Conv2d OIHW
    p['s1'], p['b1'] = bn_fold(width)
    # stride==1: Conv2d (Cout,Cin,3,3); stride!=1: ConvTranspose2d (Cin,Cout,3,3)
    p['w2'] = 0.2 * jax.random.normal(ks.pop(), (width, width, 3, 3), jnp.float32)
    p['s2'], p['b2'] = bn_fold(width)
    p['w3'] = 0.2 * jax.random.normal(ks.pop(), (out_c, width, 1, 1), jnp.float32)      # Conv2d OIHW
    p['s3'], p['b3'] = bn_fold(out_c)
    if with_sample:
        p['ws'] = 0.2 * jax.random.normal(ks.pop(), (inplanes, out_c, 1, 1), jnp.float32)  # ConvTranspose 1x1
        p['ss'], p['bs'] = bn_fold(out_c)
    return p


# --------------------------------------------------------------------------------------
# Pure-JAX reference (lax.conv_general_dilated) for correctness checking
# --------------------------------------------------------------------------------------
def reference_forward(x, p, *, stride=1, dilation=1, has_sample=False):
    dn = ('NCHW', 'OIHW', 'NCHW')
    d = dilation

    def bn(y, s, b):
        return y * s.reshape(1, -1, 1, 1) + b.reshape(1, -1, 1, 1)

    h = lax.conv_general_dilated(x, p['w1'], (1, 1), 'VALID', dimension_numbers=dn)
    h = jax.nn.relu(bn(h, p['s1'], p['b1']))
    if stride == 1:
        h = lax.conv_general_dilated(h, p['w2'], (1, 1), [(d, d), (d, d)],
                                     rhs_dilation=(d, d), dimension_numbers=dn)
    else:
        w2f = jnp.flip(p['w2'], (2, 3)).transpose(1, 0, 2, 3)
        h = lax.conv_general_dilated(h, w2f, (1, 1), [(d, 2 * d), (d, 2 * d)],
                                     lhs_dilation=(stride, stride),
                                     rhs_dilation=(d, d), dimension_numbers=dn)
    h = jax.nn.relu(bn(h, p['s2'], p['b2']))
    h = lax.conv_general_dilated(h, p['w3'], (1, 1), 'VALID', dimension_numbers=dn)
    h = bn(h, p['s3'], p['b3'])
    if has_sample:
        wsf = p['ws'].transpose(1, 0, 2, 3)
        sc = lax.conv_general_dilated(x, wsf, (1, 1), [(0, stride - 1), (0, stride - 1)],
                                      lhs_dilation=(stride, stride), dimension_numbers=dn)
        sc = bn(sc, p['ss'], p['bs'])
    else:
        sc = x
    return jax.nn.relu(h + sc)


# --------------------------------------------------------------------------------------
if __name__ == "__main__":
    key = jax.random.PRNGKey(0)
    N, inplanes, H, W = 2, 16, 8, 8
    planes = 4  # planes * expansion == inplanes -> identity shortcut valid at stride=1
    kx_, kp1, kp2 = jax.random.split(key, 3)
    x = jax.random.normal(kx_, (N, inplanes, H, W), jnp.float32)

    # case 1: stride=1 -> conv3x3 path, sample=None (identity shortcut)
    p1 = make_params(kp1, inplanes, planes, stride=1, with_sample=False)
    out1 = jax.block_until_ready(deconv_bottleneck_forward(x, p1, stride=1, dilation=1))
    ref1 = reference_forward(x, p1, stride=1, dilation=1, has_sample=False)
    assert out1.shape == (N, planes * 4, H, W)
    err1 = float(jnp.max(jnp.abs(out1 - ref1)))
    assert jnp.allclose(out1, ref1, atol=5e-2, rtol=5e-2), err1  # bf16 MXU tolerance

    # case 2: stride=2 -> deconv3x3 path, with a 1x1 transposed-conv + BN `sample` module
    p2 = make_params(kp2, inplanes, planes, stride=2, with_sample=True)
    out2 = jax.block_until_ready(
        deconv_bottleneck_forward(x, p2, stride=2, dilation=1, has_sample=True))
    ref2 = reference_forward(x, p2, stride=2, dilation=1, has_sample=True)
    assert out2.shape == (N, planes * 4, 2 * H, 2 * W)
    err2 = float(jnp.max(jnp.abs(out2 - ref2)))
    assert jnp.allclose(out2, ref2, atol=5e-2, rtol=5e-2), err2  # bf16 MXU tolerance

    print("KERNEL_OK")
</pallas_src>

<mosaic_0001>
module attributes {stable_mosaic.version = 11 : i64} {
  func.func @_gemm_bn_kernel(%arg0: i32, %arg1: i32, %arg2: memref<128x16xbf16, #tpu.memory_space<vmem>>, %arg3: memref<16x4xbf16, #tpu.memory_space<vmem>>, %arg4: memref<1x4xf32, #tpu.memory_space<vmem>>, %arg5: memref<1x4xf32, #tpu.memory_space<vmem>>, %arg6: memref<128x4xbf16, #tpu.memory_space<vmem>>) attributes {dimension_semantics = [#tpu.dimension_semantics<parallel>, #tpu.dimension_semantics<parallel>], iteration_bounds = array<i64: 1, 1>, scalar_prefetch = 0 : i64, scratch_operands = 0 : i64, tpu.core_type = #tpu.core_type<tc>, window_params = [{transform_indices = @transform_0, window_bounds = array<i64: 128, 16>}, {transform_indices = @transform_1, window_bounds = array<i64: 16, 4>}, {transform_indices = @transform_2, window_bounds = array<i64: 1, 4>}, {transform_indices = @transform_3, window_bounds = array<i64: 1, 4>}, {transform_indices = @transform_4, window_bounds = array<i64: 128, 4>}]} {
    %c0 = arith.constant 0 : index
    %c0_0 = arith.constant 0 : index
    %0 = vector.load %arg2[%c0, %c0_0] : memref<128x16xbf16, #tpu.memory_space<vmem>>, vector<128x16xbf16>
    %c0_1 = arith.constant 0 : index
    %c0_2 = arith.constant 0 : index
    %1 = vector.load %arg3[%c0_1, %c0_2] : memref<16x4xbf16, #tpu.memory_space<vmem>>, vector<16x4xbf16>
    %cst = arith.constant dense<0.000000e+00> : vector<128x4xf32>
    %2 = tpu.matmul %0, %1, %cst {dimension_numbers = #tpu.dot_dimension_numbers<[1], [0], [0], [1], [0, 0, 1, 1], [], []>} : vector<128x16xbf16>, vector<16x4xbf16>, vector<128x4xf32> -> vector<128x4xf32>
    %c0_3 = arith.constant 0 : index
    %c0_4 = arith.constant 0 : index
    %3 = vector.load %arg4[%c0_3, %c0_4] : memref<1x4xf32, #tpu.memory_space<vmem>>, vector<1x4xf32>
    %4 = vector.broadcast %3 : vector<1x4xf32> to vector<128x4xf32>
    %5 = arith.mulf %2, %4 : vector<128x4xf32>
    %c0_5 = arith.constant 0 : index
    %c0_6 = arith.constant 0 : index
    %6 = vector.load %arg5[%c0_5, %c0_6] : memref<1x4xf32, #tpu.memory_space<vmem>>, vector<1x4xf32>
    %7 = vector.broadcast %6 : vector<1x4xf32> to vector<128x4xf32>
    %8 = arith.addf %5, %7 : vector<128x4xf32>
    %cst_7 = arith.constant 0.000000e+00 : f32
    %9 = vector.broadcast %cst_7 : f32 to vector<128x4xf32>
    %10 = arith.maximumf %8, %9 : vector<128x4xf32>
    %11 = arith.truncf %10 : vector<128x4xf32> to vector<128x4xbf16>
    %c0_8 = arith.constant 0 : index
    %c0_9 = arith.constant 0 : index
    %12 = vector.load %arg6[%c0_8, %c0_9] : memref<128x4xbf16, #tpu.memory_space<vmem>>, vector<128x4xbf16>
    tpu.vector_store %arg6[%c0_8, %c0_9], %11 {strides = array<i32>} : memref<128x4xbf16, #tpu.memory_space<vmem>>, vector<128x4xbf16>,
    return
  }
  func.func @transform_0(%arg0: i32, %arg1: i32) -> (i32, i32) {
    %c0_i32 = arith.constant 0 : i32
    %c0_i32_0 = arith.constant 0 : i32
    return %arg0, %c0_i32 : i32, i32
  }
  func.func @transform_1(%arg0: i32, %arg1: i32) -> (i32, i32) {
    %c0_i32 = arith.constant 0 : i32
    %c0_i32_0 = arith.constant 0 : i32
    return %c0_i32, %arg1 : i32, i32
  }
  func.func @transform_2(%arg0: i32, %arg1: i32) -> (i32, i32) {
    %c0_i32 = arith.constant 0 : i32
    %c0_i32_0 = arith.constant 0 : i32
    return %c0_i32, %arg1 : i32, i32
  }
  func.func @transform_3(%arg0: i32, %arg1: i32) -> (i32, i32) {
    %c0_i32 = arith.constant 0 : i32
    %c0_i32_0 = arith.constant 0 : i32
    return %c0_i32, %arg1 : i32, i32
  }
  func.func @transform_4(%arg0: i32, %arg1: i32) -> (i32, i32) {
    %c0_i32 = arith.constant 0 : i32
    return %arg0, %arg1 : i32, i32
  }
}

</mosaic_0001>

<llo_original>
// kernel: tpu_custom_call.1
$region0: #{tpu_custom_call.1}
  #allocation0 [shape = 'u32[]', space=smem, size = 0x4, offset = 0x4, fixed_abs, tag = 'smem constant byte address 0x4 - core index']
  #allocation1 [shape = 'u32[144,128]{1,0:T(1,128)}', space=vmem, size = 0x12000, scoped, tag = 'internal scratch']
  %s0 = inlined_call_operand.vmem [shape: bf16[128,16], index: 0, kind: input, shape index: {}]
  %s1 = inlined_call_operand.vmem [shape: bf16[16,4], index: 1, kind: input, shape index: {}]
  %s2 = inlined_call_operand.vmem [shape: f32[1,4], index: 2, kind: input, shape index: {}]
  %s3 = inlined_call_operand.vmem [shape: f32[1,4], index: 3, kind: input, shape index: {}]
  %s4 = inlined_call_operand.vmem [shape: bf16[128,4], index: 4, kind: output, shape index: {}]
  %s5 = sld [smem:[#allocation0]]
  $region26: #{tpu_custom_call.1} parent=0
    _
  %s7 = ssub.s32 1, %s5
  %s8 = scalar_select 0, %s7, %s5
  // Predicated region
  $region2: #{tpu_custom_call.1} parent=0 // pred_check
    _
  $region3: #{tpu_custom_call.1} parent=0 // pred_check_branch
    %10 = sbr.rel (0) target = $region5
  $region4: #{tpu_custom_call.1} parent=0 // pred_region
    _
  $region5: #{tpu_custom_call.1} parent=0 // pred_fallthru
    _
  // Predicated region
  $region6: #{tpu_custom_call.1} parent=0 // pred_check
    _
  $region7: #{tpu_custom_call.1} parent=0 // pred_check_branch
    %12 = sbr.rel (0) target = $region9
  $region8: #{tpu_custom_call.1} parent=0 // pred_region
    _
  $region9: #{tpu_custom_call.1} parent=0 // pred_fallthru
    _
  // Predicated region
  $region10: #{tpu_custom_call.1} parent=0 // pred_check
    _
  $region11: #{tpu_custom_call.1} parent=0 // pred_check_branch
    %14 = sbr.rel (0) target = $region13
  $region12: #{tpu_custom_call.1} parent=0 // pred_region
    _
  $region13: #{tpu_custom_call.1} parent=0 // pred_fallthru
    _
  // Predicated region
  $region14: #{tpu_custom_call.1} parent=0 // pred_check
    _
  $region15: #{tpu_custom_call.1} parent=0 // pred_check_branch
    %16 = sbr.rel (0) target = $region17
  $region16: #{tpu_custom_call.1} parent=0 // pred_region
    _
  $region17: #{tpu_custom_call.1} parent=0 // pred_fallthru
    _
  %v18 = vld [vmem:[%s0] sm:$0xf]
  %v19 = vld [vmem:[%s0 + $0x4] sm:$0xf]
  %v20 = vld [vmem:[%s0 + $0x8] sm:$0xf]
  %v21 = vld [vmem:[%s0 + $0xc] sm:$0xf]
  %v22 = vld [vmem:[%s0 + $0x10] sm:$0xf]
  %v23 = vld [vmem:[%s0 + $0x14] sm:$0xf]
  %v24 = vld [vmem:[%s0 + $0x18] sm:$0xf]
  %v25 = vld [vmem:[%s0 + $0x1c] sm:$0xf]
  %v26 = vld [vmem:[%s0 + $0x20] sm:$0xf]
  %v27 = vld [vmem:[%s0 + $0x24] sm:$0xf]
  %v28 = vld [vmem:[%s0 + $0x28] sm:$0xf]
  %v29 = vld [vmem:[%s0 + $0x2c] sm:$0xf]
  %v30 = vld [vmem:[%s0 + $0x30] sm:$0xf]
  %v31 = vld [vmem:[%s0 + $0x34] sm:$0xf]
  %v32 = vld [vmem:[%s0 + $0x38] sm:$0xf]
  %v33 = vld [vmem:[%s0 + $0x3c] sm:$0xf]
  %v34 = vld [vmem:[%s1] sm:$0xf]
  %v35 = vld [vmem:[%s1 + $0x4] sm:$0xf]
  %v52 = vunpack.c.l.b16 %v18
  %v53 = vunpack.c.l.b16 %v19
  %v54 = vunpack.c.l.b16 %v20
  %v55 = vunpack.c.l.b16 %v21
  %v56 = vunpack.c.l.b16 %v22
  %v57 = vunpack.c.l.b16 %v23
  %v58 = vunpack.c.l.b16 %v24
  %v59 = vunpack.c.l.b16 %v25
  %v60 = vunpack.c.l.b16 %v26
  %v61 = vunpack.c.l.b16 %v27
  %v62 = vunpack.c.l.b16 %v28
  %v63 = vunpack.c.l.b16 %v29
  %v64 = vunpack.c.l.b16 %v30
  %v65 = vunpack.c.l.b16 %v31
  %v66 = vunpack.c.l.b16 %v32
  %v67 = vunpack.c.l.b16 %v33
  %v68 = vpack.c.b16 %v53, %v52
  %v69 = vpack.c.b16 %v55, %v54
  %v70 = vpack.c.b16 %v57, %v56
  %v71 = vpack.c.b16 %v59, %v58
  %v72 = vpack.c.b16 %v61, %v60
  %v73 = vpack.c.b16 %v63, %v62
  %v74 = vpack.c.b16 %v65, %v64
  %v75 = vpack.c.b16 %v67, %v66
  %v78 = vunpack.c.l.b16 %v34
  %v79 = vunpack.c.l.b16 %v35
  %v80 = vpack.c.b16 %v79, %v78
  %vm82 = vcmask 130048
  %v84 = vsel %vm82, %v68, 0
  %v87 = vsel %vm82, %v69, 0
  %v90 = vsel %vm82, %v70, 0
  %v93 = vsel %vm82, %v71, 0
  %v96 = vsel %vm82, %v72, 0
  %v99 = vsel %vm82, %v73, 0
  %v102 = vsel %vm82, %v74, 0
  %v105 = vsel %vm82, %v75, 0
  %107 = vmatprep.subr.bf16.mxu0 0
  %108 = vmatpush1.bf16.msra.mxu0 0
  %109 = vmatprep.subr.bf16.mxu0 0
  %110 = vmatpush1.bf16.msra.mxu0 0
  %111 = vmatprep.subr.bf16.mxu0 0
  %112 = vmatpush1.bf16.msra.mxu0 0
  %113 = vmatprep.subr.bf16.mxu0 0
  %114 = vmatpush1.bf16.msra.mxu0 0
  %115 = vmatprep.subr.bf16.mxu0 0
  %116 = vmatpush1.bf16.msra.mxu0 0
  %117 = vmatprep.subr.bf16.mxu0 0
  %118 = vmatpush1.bf16.msra.mxu0 0
  %119 = vmatprep.subr.bf16.mxu0 0
  %120 = vmatpush1.bf16.msra.mxu0 0
  %121 = vmatprep.subr.bf16.mxu0 0
  %122 = vmatpush1.bf16.msra.mxu0 %v80
  %123 = vmatprep.subr.bf16.mxu0 0
  %124 = vmatpush2.bf16.msra.mxu0 0
  %125 = vmatprep.subr.bf16.mxu0 0
  %126 = vmatpush2.bf16.msra.mxu0 0
  %127 = vmatprep.subr.bf16.mxu0 0
  %128 = vmatpush2.bf16.msra.mxu0 0
  %129 = vmatprep.subr.bf16.mxu0 0
  %130 = vmatpush2.bf16.msra.mxu0 0
  %131 = vmatprep.subr.bf16.mxu0 0
  %132 = vmatpush2.bf16.msra.mxu0 0
  %133 = vmatprep.subr.bf16.mxu0 0
  %134 = vmatpush2.bf16.msra.mxu0 0
  %135 = vmatprep.subr.bf16.mxu0 0
  %136 = vmatpush2.bf16.msra.mxu0 0
  %137 = vmatprep.subr.bf16.mxu0 0
  %138 = vmatpush2.bf16.msra.mxu0 0
  %139 = vmatprep.mubr.bf16.mxu0 0
  %140 = vmatmul.mubr.bf16.gmra.mxu0 %v84
  %v141 = vpop.f32.mrf.mxu0
  %v142 = vadd.f32 0.0, %v141
  %v143 = vpop.f32.mrf.mxu0
  %v144 = vpop.f32.mrf.mxu0
  %v145 = vadd.f32 0.0, %v144
  %v146 = vpop.f32.mrf.mxu0
  %147 = vmatprep.mubr.bf16.mxu0 0
  %148 = vmatmul.mubr.bf16.gmra.mxu0 %v87
  %v149 = vpop.f32.mrf.mxu0
  %v150 = vadd.f32 0.0, %v149
  %v151 = vpop.f32.mrf.mxu0
  %v152 = vpop.f32.mrf.mxu0
  %v153 = vadd.f32 0.0, %v152
  %v154 = vpop.f32.mrf.mxu0
  %155 = vmatprep.mubr.bf16.mxu0 0
  %156 = vmatmul.mubr.bf16.gmra.mxu0 %v90
  %v157 = vpop.f32.mrf.mxu0
  %v158 = vadd.f32 0.0, %v157
  %v159 = vpop.f32.mrf.mxu0
  %v160 = vpop.f32.mrf.mxu0
  %v161 = vadd.f32 0.0, %v160
  %v162 = vpop.f32.mrf.mxu0
  %163 = vmatprep.mubr.bf16.mxu0 0
  %164 = vmatmul.mubr.bf16.gmra.mxu0 %v93
  %v165 = vpop.f32.mrf.mxu0
  %v166 = vadd.f32 0.0, %v165
  %v167 = vpop.f32.mrf.mxu0
  %v168 = vpop.f32.mrf.mxu0
  %v169 = vadd.f32 0.0, %v168
  %v170 = vpop.f32.mrf.mxu0
  %171 = vmatprep.mubr.bf16.mxu0 0
  %172 = vmatmul.mubr.bf16.gmra.mxu0 %v96
  %v173 = vpop.f32.mrf.mxu0
  %v174 = vadd.f32 0.0, %v173
  %v175 = vpop.f32.mrf.mxu0
  %v176 = vpop.f32.mrf.mxu0
  %v177 = vadd.f32 0.0, %v176
  %v178 = vpop.f32.mrf.mxu0
  %179 = vmatprep.mubr.bf16.mxu0 0
  %180 = vmatmul.mubr.bf16.gmra.mxu0 %v99
  %v181 = vpop.f32.mrf.mxu0
  %v182 = vadd.f32 0.0, %v181
  %v183 = vpop.f32.mrf.mxu0
  %v184 = vpop.f32.mrf.mxu0
  %v185 = vadd.f32 0.0, %v184
  %v186 = vpop.f32.mrf.mxu0
  %187 = vmatprep.mubr.bf16.mxu0 0
  %188 = vmatmul.mubr.bf16.gmra.mxu0 %v102
  %v189 = vpop.f32.mrf.mxu0
  %v190 = vadd.f32 0.0, %v189
  %v191 = vpop.f32.mrf.mxu0
  %v192 = vpop.f32.mrf.mxu0
  %v193 = vadd.f32 0.0, %v192
  %v194 = vpop.f32.mrf.mxu0
  %195 = vmatprep.mubr.bf16.mxu0 0
  %196 = vmatmul.mubr.bf16.gmra.mxu0 %v105
  %v197 = vpop.f32.mrf.mxu0
  %v198 = vadd.f32 0.0, %v197
  %v199 = vpop.f32.mrf.mxu0
  %v200 = vpop.f32.mrf.mxu0
  %v201 = vadd.f32 0.0, %v200
  %v202 = vpop.f32.mrf.mxu0
  %203 = vdwg.mxu0
  %v204 = vld [vmem:[%s2] sm:$0x1]
  %v206 = vlaneseq
  %v207 = vshrl.u32 %v206, 7
  %v208 = vsub.s32 0, %v207
  %v209 = vrot.slane %v204, %v208
  %v211 = vmul.f32 %v142, %v209
  %v212 = vmul.f32 %v145, %v209
  %v213 = vmul.f32 %v150, %v209
  %v214 = vmul.f32 %v153, %v209
  %v215 = vmul.f32 %v158, %v209
  %v216 = vmul.f32 %v161, %v209
  %v217 = vmul.f32 %v166, %v209
  %v218 = vmul.f32 %v169, %v209
  %v219 = vmul.f32 %v174, %v209
  %v220 = vmul.f32 %v177, %v209
  %v221 = vmul.f32 %v182, %v209
  %v222 = vmul.f32 %v185, %v209
  %v223 = vmul.f32 %v190, %v209
  %v224 = vmul.f32 %v193, %v209
  %v225 = vmul.f32 %v198, %v209
  %v226 = vmul.f32 %v201, %v209
  %v227 = vld [vmem:[%s3] sm:$0x1]
  %v229 = vlaneseq
  %v230 = vshrl.u32 %v229, 7
  %v231 = vsub.s32 0, %v230
  %v232 = vrot.slane %v227, %v231
  %v234 = vadd.f32 %v211, %v232
  %v235 = vadd.f32 %v212, %v232
  %v236 = vadd.f32 %v213, %v232
  %v237 = vadd.f32 %v214, %v232
  %v238 = vadd.f32 %v215, %v232
  %v239 = vadd.f32 %v216, %v232
  %v240 = vadd.f32 %v217, %v232
  %v241 = vadd.f32 %v218, %v232
  %v242 = vadd.f32 %v219, %v232
  %v243 = vadd.f32 %v220, %v232
  %v244 = vadd.f32 %v221, %v232
  %v245 = vadd.f32 %v222, %v232
  %v246 = vadd.f32 %v223, %v232
  %v247 = vadd.f32 %v224, %v232
  %v248 = vadd.f32 %v225, %v232
  %v249 = vadd.f32 %v226, %v232
  %v250 = vmax.f32 %v234, 0.0
  %v251 = vmax.f32 %v235, 0.0
  %v252 = vmax.f32 %v236, 0.0
  %v253 = vmax.f32 %v237, 0.0
  %v254 = vmax.f32 %v238, 0.0
  %v255 = vmax.f32 %v239, 0.0
  %v256 = vmax.f32 %v240, 0.0
  %v257 = vmax.f32 %v241, 0.0
  %v258 = vmax.f32 %v242, 0.0
  %v259 = vmax.f32 %v243, 0.0
  %v260 = vmax.f32 %v244, 0.0
  %v261 = vmax.f32 %v245, 0.0
  %v262 = vmax.f32 %v246, 0.0
  %v263 = vmax.f32 %v247, 0.0
  %v264 = vmax.f32 %v248, 0.0
  %v265 = vmax.f32 %v249, 0.0
  %v266 = vpack.c.bf16 %v251, %v250
  %v267 = vpack.c.bf16 %v253, %v252
  %v268 = vpack.c.bf16 %v255, %v254
  %v269 = vpack.c.bf16 %v257, %v256
  %v270 = vpack.c.bf16 %v259, %v258
  %v271 = vpack.c.bf16 %v261, %v260
  %v272 = vpack.c.bf16 %v263, %v262
  %v273 = vpack.c.bf16 %v265, %v264
  %v282 = vunpack.c.l.b16 %v266
  %v283 = vunpack.c.h.b16 %v266
  %v284 = vunpack.c.l.b16 %v267
  %v285 = vunpack.c.h.b16 %v267
  %v286 = vunpack.c.l.b16 %v268
  %v287 = vunpack.c.h.b16 %v268
  %v288 = vunpack.c.l.b16 %v269
  %v289 = vunpack.c.h.b16 %v269
  %v290 = vunpack.c.l.b16 %v270
  %v291 = vunpack.c.h.b16 %v270
  %v292 = vunpack.c.l.b16 %v271
  %v293 = vunpack.c.h.b16 %v271
  %v294 = vunpack.c.l.b16 %v272
  %v295 = vunpack.c.h.b16 %v272
  %v296 = vunpack.c.l.b16 %v273
  %v297 = vunpack.c.h.b16 %v273
  %v298 = vpack.c.b16 %v282, %v282
  %v299 = vpack.c.b16 %v283, %v283
  %v300 = vpack.c.b16 %v284, %v284
  %v301 = vpack.c.b16 %v285, %v285
  %v302 = vpack.c.b16 %v286, %v286
  %v303 = vpack.c.b16 %v287, %v287
  %v304 = vpack.c.b16 %v288, %v288
  %v305 = vpack.c.b16 %v289, %v289
  %v306 = vpack.c.b16 %v290, %v290
  %v307 = vpack.c.b16 %v291, %v291
  %v308 = vpack.c.b16 %v292, %v292
  %v309 = vpack.c.b16 %v293, %v293
  %v310 = vpack.c.b16 %v294, %v294
  %v311 = vpack.c.b16 %v295, %v295
  %v312 = vpack.c.b16 %v296, %v296
  %v313 = vpack.c.b16 %v297, %v297
  %vm330 = vcmask 27648
  %331 = vst.msk [vmem:[%s4] sm:$0xf] %vm330, %v298
  %332 = vst.msk [vmem:[%s4 + $0x4] sm:$0xf] %vm330, %v299
  %333 = vst.msk [vmem:[%s4 + $0x8] sm:$0xf] %vm330, %v300
  %334 = vst.msk [vmem:[%s4 + $0xc] sm:$0xf] %vm330, %v301
  %335 = vst.msk [vmem:[%s4 + $0x10] sm:$0xf] %vm330, %v302
  %336 = vst.msk [vmem:[%s4 + $0x14] sm:$0xf] %vm330, %v303
  %337 = vst.msk [vmem:[%s4 + $0x18] sm:$0xf] %vm330, %v304
  %338 = vst.msk [vmem:[%s4 + $0x1c] sm:$0xf] %vm330, %v305
  %339 = vst.msk [vmem:[%s4 + $0x20] sm:$0xf] %vm330, %v306
  %340 = vst.msk [vmem:[%s4 + $0x24] sm:$0xf] %vm330, %v307
  %341 = vst.msk [vmem:[%s4 + $0x28] sm:$0xf] %vm330, %v308
  %342 = vst.msk [vmem:[%s4 + $0x2c] sm:$0xf] %vm330, %v309
  %343 = vst.msk [vmem:[%s4 + $0x30] sm:$0xf] %vm330, %v310
  %344 = vst.msk [vmem:[%s4 + $0x34] sm:$0xf] %vm330, %v311
  %345 = vst.msk [vmem:[%s4 + $0x38] sm:$0xf] %vm330, %v312
  %346 = vst.msk [vmem:[%s4 + $0x3c] sm:$0xf] %vm330, %v313
  // Predicated region
  $region18: #{tpu_custom_call.1} parent=0 // pred_check
    _
  $region19: #{tpu_custom_call.1} parent=0 // pred_check_branch
    %348 = sbr.rel (0) target = $region21
  $region20: #{tpu_custom_call.1} parent=0 // pred_region
    _
  $region21: #{tpu_custom_call.1} parent=0 // pred_fallthru
    _
  // Predicated region
  $region22: #{tpu_custom_call.1} parent=0 // pred_check
    _
  $region23: #{tpu_custom_call.1} parent=0 // pred_check_branch
    %350 = sbr.rel (0) target = $region25
  $region24: #{tpu_custom_call.1} parent=0 // pred_region
    _
  $region25: #{tpu_custom_call.1} parent=0 // pred_fallthru
    _

</llo_original>
